<compile_context>
chip_gen: v5e
topology: v5e:2x2
jax: 0.10.0
libtpu: 0.0.40
codegen_flags: <defaults>
</compile_context>

<pallas_src>
import jax
import jax.numpy as jnp
from jax.experimental import pallas as pl
from jax.experimental.pallas import tpu as pltpu

EPS = 0.001   # matches the PyTorch module (eps added, not eps**2)
LANES = 128
SUBLANES = 8


def _cdiv(a, b):
    return -(-a // b)


def _round_up(a, b):
    return _cdiv(a, b) * b


def _num_tensorcores():
    """Best-effort probe for TensorCores per chip (2 on v7x, 1 on v5e/v6e)."""
    try:
        info = pltpu.get_tpu_info()
        for name in ("num_cores", "num_tensorcores", "tensorcores_per_chip",
                     "cores_per_chip", "core_count"):
            v = getattr(info, name, None)
            if v:
                return max(1, int(v))
    except Exception:
        pass
    return 1


def _make_kernel(steps, tile_rows, nrows):
    """Grid = (num_slices [parallel], steps [arbitrary, reduction])."""

    def kernel(x_ref, y_ref, o_ref):
        c = pl.program_id(0)   # per-TensorCore slice
        i = pl.program_id(1)   # reduction step

        @pl.when(i == 0)
        def _():
            o_ref[...] = jnp.zeros_like(o_ref)

        # Explicit f32 upcast keeps arithmetic on the f32 VPU/EUP path on every
        # generation (v5e has no bf16 VPU/EUP); free relative to HBM.
        d = x_ref[...].astype(jnp.float32) - y_ref[...].astype(jnp.float32)
        v = jnp.sqrt(d * d + EPS)

        # Row-granular tail mask: boundary-padded / overshoot rows contribute
        # exactly 0.  Pure VPU compare+select, hidden under the HBM stream.
        row0 = (c * steps + i) * tile_rows
        local = jax.lax.broadcasted_iota(jnp.int32, (tile_rows, LANES), 0)
        v = jnp.where(row0 + local < nrows, v, 0.0)

        # Vreg-shaped accumulation: tree of pure VPU vreg adds, no XLU in the
        # hot loop; the (8,128) result lives in the resident output block.
        o_ref[...] += v.reshape(-1, SUBLANES, LANES).sum(axis=0)

    return kernel


def l1_charbonnier_loss(x, y, *, tile_rows=4096, num_slices=None):
    assert x.shape == y.shape, "x and y must have the same shape"
    total = x.size
    if total == 0:
        return jnp.float32(0.0)

    xf = x.reshape(-1)
    yf = y.reshape(-1)

    rows = total // LANES
    rem = total % LANES
    main = rows * LANES

    # Sub-128-element remainder: tiny (<=127 elems) plain-JAX term, exact.
    if rem:
        tx = xf[main:].astype(jnp.float32)
        ty = yf[main:].astype(jnp.float32)
        tail_sum = jnp.sum(jnp.sqrt((tx - ty) ** 2 + EPS))
    else:
        tail_sum = jnp.float32(0.0)

    if rows == 0:
        return (tail_sum / jnp.float32(total)).astype(jnp.float32)

    if rem:
        # TODO(synk): for lane-ragged sizes this prefix slice may cost one copy;
        # a 1-D BlockSpec path would avoid it entirely.
        xm = xf[:main]
        ym = yf[:main]
    else:
        xm, ym = xf, yf
    x2 = xm.reshape(rows, LANES)   # free bitcast when rem == 0
    y2 = ym.reshape(rows, LANES)

    if num_slices is None:
        num_slices = _num_tensorcores()
    num_slices = max(1, int(num_slices))

    # Big lane-dense tiles amortize the ~0.35 us/step grid overhead; multiple
    # of 16 sublanes so packed bf16 rows never split.
    tile_rows = max(16, min(int(tile_rows), _round_up(rows, 16)))
    tile_rows = _round_up(tile_rows, 16)
    if num_slices > 1 and _cdiv(rows, tile_rows) < num_slices:
        # Give every TensorCore at least one block (v7x megacore).
        tile_rows = max(16, _round_up(_cdiv(rows, num_slices), 16))

    slice_blocks = _cdiv(rows, tile_rows)
    num_slices = max(1, min(num_slices, slice_blocks))
    steps = _cdiv(slice_blocks, num_slices)

    # VMEM: double-buffered input tiles + slack for f32 elementwise temporaries.
    # Capped at 32 MiB — safe on every generation (v7x has only 64 MiB per TC).
    item = max(jnp.dtype(x.dtype).itemsize, jnp.dtype(y.dtype).itemsize)
    tile_elems = tile_rows * LANES
    vmem_need = 2 * 2 * tile_elems * item + 6 * tile_elems * 4 + (1 << 20)
    vmem_limit = int(min(max(vmem_need, 16 << 20), 32 << 20))

    in_spec = pl.BlockSpec((tile_rows, LANES), lambda c, i: (c * steps + i, 0))

    partials = pl.pallas_call(
        _make_kernel(steps, tile_rows, rows),
        out_shape=jax.ShapeDtypeStruct((num_slices * SUBLANES, LANES), jnp.float32),
        grid_spec=pltpu.PrefetchScalarGridSpec(
            num_scalar_prefetch=0,
            grid=(num_slices, steps),
            in_specs=[in_spec, in_spec],
            out_specs=pl.BlockSpec((SUBLANES, LANES), lambda c, i: (c, 0)),
        ),
        compiler_params=pltpu.CompilerParams(
            # leading axis shards across TensorCores (v7x megacore);
            # trailing axis is the reduction -> arbitrary.
            dimension_semantics=("parallel", "arbitrary"),
            vmem_limit_bytes=vmem_limit,
        ),
    )(x2, y2)

    total_sum = jnp.sum(partials) + tail_sum
    return (total_sum / jnp.float32(total)).astype(jnp.float32)


if __name__ == "__main__":
    key = jax.random.PRNGKey(0)
    kx, ky = jax.random.split(key)

    # Small NCHW inputs, numel divisible by 128 -> pure zero-copy path.
    shape = (2, 4, 16, 16)
    x = jax.random.normal(kx, shape, dtype=jnp.float32)
    y = jax.random.normal(ky, shape, dtype=jnp.float32)
    loss = l1_charbonnier_loss(x, y)
    jax.block_until_ready(loss)
    ref = jnp.mean(jnp.sqrt((x - y) ** 2 + EPS))
    assert jnp.allclose(loss, ref, rtol=1e-5, atol=1e-6), (loss, ref)

    # Ragged shape: exercises the in-kernel row mask and the sub-128 tail path.
    shape2 = (2, 3, 17, 15)
    x2 = jax.random.normal(kx, shape2, dtype=jnp.float32)
    y2 = jax.random.normal(ky, shape2, dtype=jnp.float32)
    loss2 = l1_charbonnier_loss(x2, y2)
    jax.block_until_ready(loss2)
    ref2 = jnp.mean(jnp.sqrt((x2 - y2) ** 2 + EPS))
    assert jnp.allclose(loss2, ref2, rtol=1e-5, atol=1e-6), (loss2, ref2)

    print("KERNEL_OK")
</pallas_src>

<mosaic_0001>
module attributes {stable_mosaic.version = 11 : i64} {
  func.func @kernel(%arg0: i32, %arg1: i32, %arg2: memref<16x128xf32, #tpu.memory_space<vmem>>, %arg3: memref<16x128xf32, #tpu.memory_space<vmem>>, %arg4: memref<8x128xf32, #tpu.memory_space<vmem>>) attributes {dimension_semantics = [#tpu.dimension_semantics<parallel>, #tpu.dimension_semantics<arbitrary>], iteration_bounds = array<i64: 1, 1>, scalar_prefetch = 0 : i64, scratch_operands = 0 : i64, tpu.core_type = #tpu.core_type<tc>, window_params = [{transform_indices = @transform_0, window_bounds = array<i64: 16, 128>}, {transform_indices = @transform_1, window_bounds = array<i64: 16, 128>}, {transform_indices = @transform_2, window_bounds = array<i64: 8, 128>}]} {
    %c0_i32 = arith.constant 0 : i32
    %0 = arith.cmpi eq, %arg1, %c0_i32 : i32
    %1 = arith.extui %0 : i1 to i32
    %c0_i32_0 = arith.constant 0 : i32
    %2 = arith.cmpi ne, %1, %c0_i32_0 : i32
    scf.if %2 {
      %cst_11 = arith.constant 0.000000e+00 : f32
      %25 = vector.broadcast %cst_11 : f32 to vector<8x128xf32>
      %c0_12 = arith.constant 0 : index
      %c0_13 = arith.constant 0 : index
      %26 = vector.load %arg4[%c0_12, %c0_13] : memref<8x128xf32, #tpu.memory_space<vmem>>, vector<8x128xf32>
      tpu.vector_store %arg4[%c0_12, %c0_13], %25 {strides = array<i32>} : memref<8x128xf32, #tpu.memory_space<vmem>>, vector<8x128xf32>,
    } else {
    }
    %c0 = arith.constant 0 : index
    %c0_1 = arith.constant 0 : index
    %3 = vector.load %arg2[%c0, %c0_1] : memref<16x128xf32, #tpu.memory_space<vmem>>, vector<16x128xf32>
    %c0_2 = arith.constant 0 : index
    %c0_3 = arith.constant 0 : index
    %4 = vector.load %arg3[%c0_2, %c0_3] : memref<16x128xf32, #tpu.memory_space<vmem>>, vector<16x128xf32>
    %5 = arith.subf %3, %4 : vector<16x128xf32>
    %6 = arith.mulf %5, %5 : vector<16x128xf32>
    %cst = arith.constant 1.000000e-03 : f32
    %7 = vector.broadcast %cst : f32 to vector<16x128xf32>
    %8 = arith.addf %6, %7 : vector<16x128xf32>
    %9 = math.sqrt %8 : vector<16x128xf32>
    %c1_i32 = arith.constant 1 : i32
    %10 = arith.muli %arg0, %c1_i32 : i32
    %11 = arith.addi %10, %arg1 : i32
    %c16_i32 = arith.constant 16 : i32
    %12 = arith.muli %11, %c16_i32 : i32
    %13 = tpu.iota {dimensions = array<i32: 0>} : vector<16x128xi32>
    %14 = vector.broadcast %12 : i32 to vector<16x128xi32>
    %15 = arith.addi %14, %13 : vector<16x128xi32>
    %c16_i32_4 = arith.constant 16 : i32
    %16 = vector.broadcast %c16_i32_4 : i32 to vector<16x128xi32>
    %17 = arith.cmpi slt, %15, %16 : vector<16x128xi32>
    %cst_5 = arith.constant 0.000000e+00 : f32
    %18 = vector.broadcast %cst_5 : f32 to vector<16x128xf32>
    %19 = arith.select %17, %9, %18 : vector<16x128xi1>, vector<16x128xf32>
    %c0_6 = arith.constant 0 : index
    %c0_7 = arith.constant 0 : index
    %20 = vector.load %arg4[%c0_6, %c0_7] : memref<8x128xf32, #tpu.memory_space<vmem>>, vector<8x128xf32>
    %21 = vector.shape_cast %19 : vector<16x128xf32> to vector<2x8x128xf32>
    %cst_8 = arith.constant dense<0.000000e+00> : vector<8x128xf32>
    %22 = vector.multi_reduction <add>, %21, %cst_8 [0] : vector<2x8x128xf32> to vector<8x128xf32>
    %23 = arith.addf %20, %22 : vector<8x128xf32>
    %c0_9 = arith.constant 0 : index
    %c0_10 = arith.constant 0 : index
    %24 = vector.load %arg4[%c0_9, %c0_10] : memref<8x128xf32, #tpu.memory_space<vmem>>, vector<8x128xf32>
    tpu.vector_store %arg4[%c0_9, %c0_10], %23 {strides = array<i32>} : memref<8x128xf32, #tpu.memory_space<vmem>>, vector<8x128xf32>,
    return
  }
  func.func @transform_0(%arg0: i32, %arg1: i32) -> (i32, i32) {
    %c1_i32 = arith.constant 1 : i32
    %0 = arith.muli %arg0, %c1_i32 : i32
    %1 = arith.addi %0, %arg1 : i32
    %c0_i32 = arith.constant 0 : i32
    %c0_i32_0 = arith.constant 0 : i32
    return %1, %c0_i32 : i32, i32
  }
  func.func @transform_1(%arg0: i32, %arg1: i32) -> (i32, i32) {
    %c1_i32 = arith.constant 1 : i32
    %0 = arith.muli %arg0, %c1_i32 : i32
    %1 = arith.addi %0, %arg1 : i32
    %c0_i32 = arith.constant 0 : i32
    %c0_i32_0 = arith.constant 0 : i32
    return %1, %c0_i32 : i32, i32
  }
  func.func @transform_2(%arg0: i32, %arg1: i32) -> (i32, i32) {
    %c0_i32 = arith.constant 0 : i32
    %c0_i32_0 = arith.constant 0 : i32
    return %arg0, %c0_i32 : i32, i32
  }
}

</mosaic_0001>

<llo_original>
// kernel: tpu_custom_call.1
$region0: #{tpu_custom_call.1}
  #allocation0 [shape = 'u32[]', space=smem, size = 0x4, offset = 0x4, fixed_abs, tag = 'smem constant byte address 0x4 - core index']
  #allocation1 [shape = 'u32[72,128]{1,0:T(1,128)}', space=vmem, size = 0x9000, scoped, tag = 'internal scratch']
  %s0 = inlined_call_operand.hbm [shape: f32[16,128], index: 0, kind: input, shape index: {}]
  %s1 = inlined_call_operand.hbm [shape: f32[16,128], index: 1, kind: input, shape index: {}]
  %s2 = inlined_call_operand.hbm [shape: f32[8,128], index: 2, kind: output, shape index: {}]
  %s3 = sld [smem:[#allocation0]]
  $region30: #{tpu_custom_call.1} parent=0
    _
  %s5 = ssub.s32 1, %s3
  %s6 = scalar_select 0, %s5, %s3
  $region1: #{tpu_custom_call.1} parent=0
    #allocation2 [shape = 'u8[8192]{0}', space=vmem, size = 0x2000, scoped, tag = 'input window, operand 0, single buffered']
    #allocation3 [shape = 's32[1]{0}', space=sflag, size = 0x4, scoped, tag = 'scoped memory for tpu_custom_call.1']
    #allocation4 [shape = 's32[1]{0}', space=sflag, size = 0x4, scoped, tag = 'scoped memory for tpu_custom_call.1']
    #allocation5 [shape = 'u8[8192]{0}', space=vmem, size = 0x2000, scoped, tag = 'input window, operand 1, single buffered']
    #allocation6 [shape = 's32[1]{0}', space=sflag, size = 0x4, scoped, tag = 'scoped memory for tpu_custom_call.1']
    #allocation7 [shape = 'u8[4096]{0}', space=vmem, size = 0x1000, scoped, tag = 'output window, operand 0, single buffered']
    %7 = vsyncpa [#allocation3], 0
    %8 = vsyncpa [#allocation6], 0
    %9 = vsyncpa [#allocation4], 0
    // Predicated region
    $region2: #{tpu_custom_call.1} parent=1 // pred_check
      _
    $region3: #{tpu_custom_call.1} parent=1 // pred_check_branch
      %11 = sbr.rel (0) target = $region5
    $region4: #{tpu_custom_call.1} parent=1 // pred_region
      %s12 = sadd.s32 0, 0
      %s13 = smul.u32 2, %s12
      %15 = vsyncadd [#allocation3], 0
      %s16 = smul.addr %s13, 8
      %s17 = scalar_lea.hbm %s0, %s16
      %s18 = sshll.u32 %s17, 4
      %s19 = int_to_ptr.hbm [resolvable:$true] %s18
      %s20 = sshll.u32 [#allocation2], 4
      %s21 = int_to_ptr.vmem [resolvable:$true] %s20
      %26 = dma.hbm_to_vmem [thread:$0]  %s19, 256, %s21, [#allocation3], 128, 128, 8
    $region5: #{tpu_custom_call.1} parent=1 // pred_fallthru
      _
    // Predicated region
    $region6: #{tpu_custom_call.1} parent=1 // pred_check
      _
    $region7: #{tpu_custom_call.1} parent=1 // pred_check_branch
      %28 = sbr.rel (0) target = $region9
    $region8: #{tpu_custom_call.1} parent=1 // pred_region
      %s29 = sadd.s32 0, 0
      %s30 = smul.u32 2, %s29
      %32 = vsyncadd [#allocation6], 0
      %s33 = smul.addr %s30, 8
      %s34 = scalar_lea.hbm %s1, %s33
      %s35 = sshll.u32 %s34, 4
      %s36 = int_to_ptr.hbm [resolvable:$true] %s35
      %s37 = sshll.u32 [#allocation5], 4
      %s38 = int_to_ptr.vmem [resolvable:$true] %s37
      %43 = dma.hbm_to_vmem [thread:$0]  %s36, 256, %s38, [#allocation6], 128, 128, 8
    $region9: #{tpu_custom_call.1} parent=1 // pred_fallthru
      _
    // Predicated region
    $region10: #{tpu_custom_call.1} parent=1 // pred_check
      _
    $region11: #{tpu_custom_call.1} parent=1 // pred_check_branch
      %45 = sbr.rel (0) target = $region13
    $region12: #{tpu_custom_call.1} parent=1 // pred_region
      %47 = dma.done [#allocation3], 256
    $region13: #{tpu_custom_call.1} parent=1 // pred_fallthru
      _
    // Predicated region
    $region14: #{tpu_custom_call.1} parent=1 // pred_check
      _
    $region15: #{tpu_custom_call.1} parent=1 // pred_check_branch
      %49 = sbr.rel (0) target = $region17
    $region16: #{tpu_custom_call.1} parent=1 // pred_region
      %51 = dma.done [#allocation6], 256
    $region17: #{tpu_custom_call.1} parent=1 // pred_fallthru
      _
    %s52 = sadd.s32 0, 0
    %s53 = smul.u32 2, %s52
    %s54 = sadd.s32 0, 0
    %s55 = smul.u32 2, %s54
    %p56 = scmp.eq.s32.totalorder 0, 0
    // Predicated region
    $region18: #{tpu_custom_call.1} parent=1 // pred_check
      %p57 = pneg %p56
    $region19: #{tpu_custom_call.1} parent=1 // pred_check_branch
      %59 = sbr.rel (%p57) target = $region21
    $region20: #{tpu_custom_call.1} parent=1 // pred_region
      %60 = vst [vmem:[#allocation7] sm:$0xff] 0.0
    $region21: #{tpu_custom_call.1} parent=1 // pred_fallthru
      _
    %v61 = vld [vmem:[#allocation2] sm:$0xff]
    %v62 = vld [vmem:[#allocation2 + $0x8] sm:$0xff]
    %v63 = vld [vmem:[#allocation5] sm:$0xff]
    %v64 = vld [vmem:[#allocation5 + $0x8] sm:$0xff]
    %v65 = vsub.f32 %v61, %v63
    %v66 = vsub.f32 %v62, %v64
    %v67 = vmul.f32 %v65, %v65
    %v68 = vmul.f32 %v66, %v66
    %v69 = vadd.f32 %v67, 0.001
    %v70 = vadd.f32 %v68, 0.001
    %v71 = vrsqrt.pop %v69
    %v72 = vmul.f32 %v71, %v69
    %v73 = vmul.f32 %v72, %v71
    %v74 = vmul.f32 0.5, %v73
    %v75 = vsub.f32 1.5, %v74
    %v76 = vmul.f32 %v71, %v75
    %v77 = vmul.f32 %v69, %v76
    %vm78 = vcmp.eq.f32.partialorder %v69, inf
    %v79 = vsel %vm78, %v69, %v77
    %vm80 = vcmp.eq.f32.partialorder %v69, 0.0
    %v81 = vand.u32 %v69, 2147483648
    %v82 = vsel %vm80, %v81, %v79
    %v83 = vrsqrt.pop %v70
    %v84 = vmul.f32 %v83, %v70
    %v85 = vmul.f32 %v84, %v83
    %v86 = vmul.f32 0.5, %v85
    %v87 = vsub.f32 1.5, %v86
    %v88 = vmul.f32 %v83, %v87
    %v89 = vmul.f32 %v70, %v88
    %vm90 = vcmp.eq.f32.partialorder %v70, inf
    %v91 = vsel %vm90, %v70, %v89
    %vm92 = vcmp.eq.f32.partialorder %v70, 0.0
    %v93 = vand.u32 %v70, 2147483648
    %v94 = vsel %vm92, %v93, %v91
    %s95 = sadd.s32 0, 0
    %s96 = smul.u32 %s95, 16
    %v97 = vlaneseq
    %v98 = vshrl.u32 %v97, 7
    %v99 = vadd.s32 %v98, 8
    %v100 = vstv %s96
    %v101 = vadd.s32 %v100, %v98
    %v102 = vadd.s32 %v100, %v99
    %vm103 = vcmp.lt.s32.totalorder %v101, 16
    %vm104 = vcmp.lt.s32.totalorder %v102, 16
    %v105 = vsel %vm103, %v82, 0.0
    %v106 = vsel %vm104, %v94, 0.0
    %v107 = vld [vmem:[#allocation7] sm:$0xff]
    %v108 = vadd.f32 %v105, %v106
    %v109 = vadd.f32 %v107, %v108
    %110 = vst [vmem:[#allocation7] sm:$0xff] %v109
    // Predicated region
    $region22: #{tpu_custom_call.1} parent=1 // pred_check
      _
    $region23: #{tpu_custom_call.1} parent=1 // pred_check_branch
      %112 = sbr.rel (0) target = $region25
    $region24: #{tpu_custom_call.1} parent=1 // pred_region
      %114 = vsyncadd [#allocation4], 0
      %s116 = sshll.u32 [#allocation7], 4
      %s117 = int_to_ptr.vmem [resolvable:$true] %s116
      %s118 = sshll.u32 %s2, 4
      %s119 = int_to_ptr.hbm [resolvable:$true] %s118
      %121 = dma.vmem_to_hbm [thread:$0]  %s117, 128, %s119, [#allocation4]
    $region25: #{tpu_custom_call.1} parent=1 // pred_fallthru
      _
    // Predicated region
    $region26: #{tpu_custom_call.1} parent=1 // pred_check
      _
    $region27: #{tpu_custom_call.1} parent=1 // pred_check_branch
      %123 = sbr.rel (0) target = $region29
    $region28: #{tpu_custom_call.1} parent=1 // pred_region
      %125 = dma.done [#allocation4], 128
    $region29: #{tpu_custom_call.1} parent=1 // pred_fallthru
      _
    %126 = vsyncpa [#allocation3], 1
    %127 = vsyncpa [#allocation6], 1
    %128 = vsyncpa [#allocation4], 1

</llo_original>
